<compile_context>
chip_gen: v7x
topology: tpu7x:2x2x1
jax: 0.10.0
libtpu: 0.0.40
codegen_flags: <defaults>
</compile_context>

<pallas_src>
import numpy as np
import jax
import jax.numpy as jnp
from jax.experimental import pallas as pl
from jax.experimental.pallas import tpu as pltpu

PI = 3.1416            # matches the PyTorch module's constant (not math.pi)
EMBED_DIM = 2
STATE_SPACE = 16       # state_space (synthetic)
ACTION_SPACE = 4       # action_space (synthetic)
HIDDEN = 256
OUT_PAD = 128          # lane-dense output width (multiple of 128 >= ACTION_SPACE)
BATCH = 16             # number of (obs, tau) rows for the small-shape demo
TILE_M = 1024          # rows per grid step once the batch outgrows one step


def quantile_kernel(tau_ref, obs_ref,
                    ew1_ref, eb0_ref,
                    w1_ref, b1_ref,
                    w2_ref, b2_ref,
                    w3_ref, b3_ref,
                    wa_ref, ba_ref,
                    out_ref):
    mm_dtype = w1_ref.dtype   # f32 (exact parity) or bf16 (fast MXU path)

    # --- tau embedding on the VPU (no degenerate K=2 MXU matmul), all f32.
    #     eb0 = ew[0] + eb  (cos(tau*0) == 1 column folded into the bias)
    #     ew1 = ew[1]
    cos_t = jnp.cos(tau_ref[...] * PI)                                # (TM, 1)
    h_tau = jnp.maximum(cos_t * ew1_ref[...] + eb0_ref[...], 0.0)     # (TM, H)

    # --- obs branch: fc1 -> ReLU  (MXU, f32 accumulation)
    h_obs = jnp.maximum(
        jnp.dot(obs_ref[...].astype(mm_dtype), w1_ref[...],
                preferred_element_type=jnp.float32) + b1_ref[...], 0.0)

    # --- fuse branches (elementwise, f32) and run the MLP head
    x = h_obs * h_tau
    x = jnp.maximum(
        jnp.dot(x.astype(mm_dtype), w2_ref[...],
                preferred_element_type=jnp.float32) + b2_ref[...], 0.0)
    x = jnp.maximum(
        jnp.dot(x.astype(mm_dtype), w3_ref[...],
                preferred_element_type=jnp.float32) + b3_ref[...], 0.0)
    # lane-padded (TM, 128) output -> unmasked full-lane stores
    out_ref[...] = jnp.dot(x.astype(mm_dtype), wa_ref[...],
                           preferred_element_type=jnp.float32) + ba_ref[...]


def prepare_params(params, matmul_dtype=jnp.float32):
    """One-time parameter prep (was previously re-executed every call).

    - Folds the constant first embedding row into the bias: eb0 = ew[0] + eb.
    - Slices ew[1] for the VPU tau embedding.
    - Zero-pads the 4-wide acts head to OUT_PAD lanes (unmasked stores).
    - Optionally casts the MXU weight operands to bf16 (biases / VPU params
      stay f32).
    """
    (ew, eb, w1, b1, w2, b2, w3, b3, wa, ba) = params
    eb0 = (ew[0:1, :] + eb).astype(jnp.float32)                       # (1, H)
    ew1 = ew[1:2, :].astype(jnp.float32)                              # (1, H)
    wa_p = jnp.pad(wa, ((0, 0), (0, OUT_PAD - ACTION_SPACE)))
    ba_p = jnp.pad(ba, ((0, 0), (0, OUT_PAD - ACTION_SPACE)))
    cast = lambda w: w.astype(matmul_dtype)
    return (ew1, eb0,
            cast(w1), b1.astype(jnp.float32),
            cast(w2), b2.astype(jnp.float32),
            cast(w3), b3.astype(jnp.float32),
            cast(wa_p), ba_p.astype(jnp.float32))


def _choose_tiling(n):
    """Return (tm, n_pad, n_tiles). Small batches run in one grid step; large
    batches use ~TILE_M-row tiles with an EVEN tile count so v7x's two
    TensorCores get balanced work along the 'parallel' batch axis."""
    if n <= TILE_M:
        return n, n, 1
    n_tiles = -(-n // TILE_M)          # ceil
    if n_tiles % 2:                    # even grid -> balanced 2-TC sharding
        n_tiles += 1
    tm = -(-n // n_tiles)              # ceil
    tm = -(-tm // 8) * 8               # sublane-aligned tile height
    return tm, tm * n_tiles, n_tiles


@jax.jit
def quantile_forward(obs, tau, prepared):
    """obs: (N, STATE_SPACE) f32, tau: (N,) f32, prepared: prepare_params(...)
    -> (N, ACTION_SPACE) f32."""
    (ew1, eb0, w1, b1, w2, b2, w3, b3, wa_p, ba_p) = prepared
    n = obs.shape[0]
    tm, n_pad, n_tiles = _choose_tiling(n)
    if n_pad != n:
        obs = jnp.pad(obs, ((0, n_pad - n), (0, 0)))
        tau = jnp.pad(tau, (0, n_pad - n))

    tau2d = tau.reshape(-1, 1).astype(jnp.float32)                    # (Np, 1)

    shared = lambda i: (0, 0)     # weights: same block every grid step (resident)
    batched = lambda i: (i, 0)    # activations: tile over batch rows

    out = pl.pallas_call(
        quantile_kernel,
        out_shape=jax.ShapeDtypeStruct((n_pad, OUT_PAD), jnp.float32),
        grid_spec=pltpu.PrefetchScalarGridSpec(
            num_scalar_prefetch=0,
            grid=(n_tiles,),
            in_specs=[
                pl.BlockSpec((tm, 1), batched),               # tau
                pl.BlockSpec((tm, STATE_SPACE), batched),     # obs
                pl.BlockSpec((1, HIDDEN), shared),            # ew[1]
                pl.BlockSpec((1, HIDDEN), shared),            # ew[0] + eb
                pl.BlockSpec((STATE_SPACE, HIDDEN), shared),  # fc1 W
                pl.BlockSpec((1, HIDDEN), shared),            # fc1 b
                pl.BlockSpec((HIDDEN, HIDDEN), shared),       # fc2 W
                pl.BlockSpec((1, HIDDEN), shared),            # fc2 b
                pl.BlockSpec((HIDDEN, HIDDEN), shared),       # fc3 W
                pl.BlockSpec((1, HIDDEN), shared),            # fc3 b
                pl.BlockSpec((HIDDEN, OUT_PAD), shared),      # acts W (padded)
                pl.BlockSpec((1, OUT_PAD), shared),           # acts b (padded)
            ],
            out_specs=pl.BlockSpec((tm, OUT_PAD), batched),
        ),
        compiler_params=pltpu.CompilerParams(
            dimension_semantics=("parallel",)),
    )(tau2d, obs, ew1, eb0, w1, b1, w2, b2, w3, b3, wa_p, ba_p)

    return out[:n, :ACTION_SPACE]


def init_params(key):
    """Deterministic synthetic weights, stored as (in_features, out_features)."""
    ks = jax.random.split(key, 10)
    def w(k, fin, fout):
        return jax.random.normal(k, (fin, fout), jnp.float32) * (1.0 / np.sqrt(fin))
    def b(k, fout):
        return jax.random.normal(k, (1, fout), jnp.float32) * 0.01
    return (
        w(ks[0], EMBED_DIM, HIDDEN),    b(ks[1], HIDDEN),        # embed
        w(ks[2], STATE_SPACE, HIDDEN),  b(ks[3], HIDDEN),        # fc1
        w(ks[4], HIDDEN, HIDDEN),       b(ks[5], HIDDEN),        # fc2
        w(ks[6], HIDDEN, HIDDEN),       b(ks[7], HIDDEN),        # fc3
        w(ks[8], HIDDEN, ACTION_SPACE), b(ks[9], ACTION_SPACE),  # acts
    )


def reference_forward(obs, tau, params):
    """Plain-JAX reference mirroring the PyTorch forward exactly (f32)."""
    (ew, eb, w1, b1, w2, b2, w3, b3, wa, ba) = params
    taus = jnp.broadcast_to(tau.reshape(-1, 1), (tau.shape[0], EMBED_DIM))
    embed_tau = taus * (jnp.arange(EMBED_DIM, dtype=jnp.float32) * PI)
    embed_tau = jax.nn.relu(jnp.cos(embed_tau) @ ew + eb)
    h = jax.nn.relu(obs @ w1 + b1)
    x = h * embed_tau
    x = jax.nn.relu(x @ w2 + b2)
    x = jax.nn.relu(x @ w3 + b3)
    return x @ wa + ba


if __name__ == "__main__":
    key = jax.random.PRNGKey(0)
    k_obs, k_tau, k_par = jax.random.split(key, 3)

    obs = jax.random.normal(k_obs, (BATCH, STATE_SPACE), jnp.float32)
    tau = jax.random.uniform(k_tau, (BATCH,), jnp.float32)
    params = init_params(k_par)
    ref = jax.block_until_ready(reference_forward(obs, tau, params))

    # 1) Exact-parity f32 path (single grid step, BATCH=16).
    prep_f32 = prepare_params(params, matmul_dtype=jnp.float32)
    out_f32 = jax.block_until_ready(quantile_forward(obs, tau, prep_f32))
    assert out_f32.shape == (BATCH, ACTION_SPACE)
    np.testing.assert_allclose(np.asarray(out_f32), np.asarray(ref),
                               rtol=1e-5, atol=1e-4)

    # 2) bf16-weight fast path (MXU-native, f32 accumulation) — looser tolerance.
    prep_bf16 = prepare_params(params, matmul_dtype=jnp.bfloat16)
    out_bf16 = jax.block_until_ready(quantile_forward(obs, tau, prep_bf16))
    np.testing.assert_allclose(np.asarray(out_bf16), np.asarray(ref),
                               rtol=3e-2, atol=1.5e-1)

    # 3) Tiled path: non-multiple batch exercises padding + the even-grid
    #    (2-TC friendly) tiling.  Still tiny data (2500 x 16 f32).
    n_big = 2500
    kb_obs, kb_tau = jax.random.split(jax.random.PRNGKey(1), 2)
    obs_b = jax.random.normal(kb_obs, (n_big, STATE_SPACE), jnp.float32)
    tau_b = jax.random.uniform(kb_tau, (n_big,), jnp.float32)
    out_b = jax.block_until_ready(quantile_forward(obs_b, tau_b, prep_f32))
    ref_b = jax.block_until_ready(reference_forward(obs_b, tau_b, params))
    assert out_b.shape == (n_big, ACTION_SPACE)
    np.testing.assert_allclose(np.asarray(out_b), np.asarray(ref_b),
                               rtol=1e-5, atol=1e-4)

    print("KERNEL_OK")
</pallas_src>

<mosaic_0001>
module attributes {stable_mosaic.version = 11 : i64} {
  func.func @quantile_kernel(%arg0: i32, %arg1: memref<16x1xf32, #tpu.memory_space<vmem>>, %arg2: memref<16x16xf32, #tpu.memory_space<vmem>>, %arg3: memref<1x256xf32, #tpu.memory_space<vmem>>, %arg4: memref<1x256xf32, #tpu.memory_space<vmem>>, %arg5: memref<16x256xf32, #tpu.memory_space<vmem>>, %arg6: memref<1x256xf32, #tpu.memory_space<vmem>>, %arg7: memref<256x256xf32, #tpu.memory_space<vmem>>, %arg8: memref<1x256xf32, #tpu.memory_space<vmem>>, %arg9: memref<256x256xf32, #tpu.memory_space<vmem>>, %arg10: memref<1x256xf32, #tpu.memory_space<vmem>>, %arg11: memref<256x128xf32, #tpu.memory_space<vmem>>, %arg12: memref<1x128xf32, #tpu.memory_space<vmem>>, %arg13: memref<16x128xf32, #tpu.memory_space<vmem>>) attributes {dimension_semantics = [#tpu.dimension_semantics<parallel>], iteration_bounds = array<i64: 1>, scalar_prefetch = 0 : i64, scratch_operands = 0 : i64, tpu.core_type = #tpu.core_type<tc>, window_params = [{transform_indices = @transform_0, window_bounds = array<i64: 16, 1>}, {transform_indices = @transform_1, window_bounds = array<i64: 16, 16>}, {pipeline_mode = #tpu.pipeline_mode<synchronous>, transform_indices = @transform_2, window_bounds = array<i64: 1, 256>}, {pipeline_mode = #tpu.pipeline_mode<synchronous>, transform_indices = @transform_3, window_bounds = array<i64: 1, 256>}, {pipeline_mode = #tpu.pipeline_mode<synchronous>, transform_indices = @transform_4, window_bounds = array<i64: 16, 256>}, {pipeline_mode = #tpu.pipeline_mode<synchronous>, transform_indices = @transform_5, window_bounds = array<i64: 1, 256>}, {pipeline_mode = #tpu.pipeline_mode<synchronous>, transform_indices = @transform_6, window_bounds = array<i64: 256, 256>}, {pipeline_mode = #tpu.pipeline_mode<synchronous>, transform_indices = @transform_7, window_bounds = array<i64: 1, 256>}, {pipeline_mode = #tpu.pipeline_mode<synchronous>, transform_indices = @transform_8, window_bounds = array<i64: 256, 256>}, {pipeline_mode = #tpu.pipeline_mode<synchronous>, transform_indices = @transform_9, window_bounds = array<i64: 1, 256>}, {pipeline_mode = #tpu.pipeline_mode<synchronous>, transform_indices = @transform_10, window_bounds = array<i64: 256, 128>}, {pipeline_mode = #tpu.pipeline_mode<synchronous>, transform_indices = @transform_11, window_bounds = array<i64: 1, 128>}, {transform_indices = @transform_12, window_bounds = array<i64: 16, 128>}]} {
    %c0 = arith.constant 0 : index
    %c0_0 = arith.constant 0 : index
    %0 = vector.load %arg1[%c0, %c0_0] : memref<16x1xf32, #tpu.memory_space<vmem>>, vector<16x1xf32>
    %cst = arith.constant 3.141600e+00 : f32
    %1 = vector.broadcast %cst : f32 to vector<16x1xf32>
    %2 = arith.mulf %0, %1 : vector<16x1xf32>
    %3 = math.cos %2 : vector<16x1xf32>
    %c0_1 = arith.constant 0 : index
    %c0_2 = arith.constant 0 : index
    %4 = vector.load %arg3[%c0_1, %c0_2] : memref<1x256xf32, #tpu.memory_space<vmem>>, vector<1x256xf32>
    %5 = vector.broadcast %3 : vector<16x1xf32> to vector<16x256xf32>
    %6 = vector.broadcast %4 : vector<1x256xf32> to vector<16x256xf32>
    %7 = arith.mulf %5, %6 : vector<16x256xf32>
    %c0_3 = arith.constant 0 : index
    %c0_4 = arith.constant 0 : index
    %8 = vector.load %arg4[%c0_3, %c0_4] : memref<1x256xf32, #tpu.memory_space<vmem>>, vector<1x256xf32>
    %9 = vector.broadcast %8 : vector<1x256xf32> to vector<16x256xf32>
    %10 = arith.addf %7, %9 : vector<16x256xf32>
    %cst_5 = arith.constant 0.000000e+00 : f32
    %11 = vector.broadcast %cst_5 : f32 to vector<16x256xf32>
    %12 = arith.maximumf %10, %11 : vector<16x256xf32>
    %c0_6 = arith.constant 0 : index
    %c0_7 = arith.constant 0 : index
    %13 = vector.load %arg2[%c0_6, %c0_7] : memref<16x16xf32, #tpu.memory_space<vmem>>, vector<16x16xf32>
    %c0_8 = arith.constant 0 : index
    %c0_9 = arith.constant 0 : index
    %14 = vector.load %arg5[%c0_8, %c0_9] : memref<16x256xf32, #tpu.memory_space<vmem>>, vector<16x256xf32>
    %cst_10 = arith.constant dense<0.000000e+00> : vector<16x256xf32>
    %15 = tpu.matmul %13, %14, %cst_10 {dimension_numbers = #tpu.dot_dimension_numbers<[1], [0], [0], [1], [0, 0, 1, 1], [], []>} : vector<16x16xf32>, vector<16x256xf32>, vector<16x256xf32> -> vector<16x256xf32>
    %c0_11 = arith.constant 0 : index
    %c0_12 = arith.constant 0 : index
    %16 = vector.load %arg6[%c0_11, %c0_12] : memref<1x256xf32, #tpu.memory_space<vmem>>, vector<1x256xf32>
    %17 = vector.broadcast %16 : vector<1x256xf32> to vector<16x256xf32>
    %18 = arith.addf %15, %17 : vector<16x256xf32>
    %cst_13 = arith.constant 0.000000e+00 : f32
    %19 = vector.broadcast %cst_13 : f32 to vector<16x256xf32>
    %20 = arith.maximumf %18, %19 : vector<16x256xf32>
    %21 = arith.mulf %20, %12 : vector<16x256xf32>
    %c0_14 = arith.constant 0 : index
    %c0_15 = arith.constant 0 : index
    %22 = vector.load %arg7[%c0_14, %c0_15] : memref<256x256xf32, #tpu.memory_space<vmem>>, vector<256x256xf32>
    %cst_16 = arith.constant dense<0.000000e+00> : vector<16x256xf32>
    %23 = tpu.matmul %21, %22, %cst_16 {dimension_numbers = #tpu.dot_dimension_numbers<[1], [0], [0], [1], [0, 0, 1, 1], [], []>} : vector<16x256xf32>, vector<256x256xf32>, vector<16x256xf32> -> vector<16x256xf32>
    %c0_17 = arith.constant 0 : index
    %c0_18 = arith.constant 0 : index
    %24 = vector.load %arg8[%c0_17, %c0_18] : memref<1x256xf32, #tpu.memory_space<vmem>>, vector<1x256xf32>
    %25 = vector.broadcast %24 : vector<1x256xf32> to vector<16x256xf32>
    %26 = arith.addf %23, %25 : vector<16x256xf32>
    %cst_19 = arith.constant 0.000000e+00 : f32
    %27 = vector.broadcast %cst_19 : f32 to vector<16x256xf32>
    %28 = arith.maximumf %26, %27 : vector<16x256xf32>
    %c0_20 = arith.constant 0 : index
    %c0_21 = arith.constant 0 : index
    %29 = vector.load %arg9[%c0_20, %c0_21] : memref<256x256xf32, #tpu.memory_space<vmem>>, vector<256x256xf32>
    %cst_22 = arith.constant dense<0.000000e+00> : vector<16x256xf32>
    %30 = tpu.matmul %28, %29, %cst_22 {dimension_numbers = #tpu.dot_dimension_numbers<[1], [0], [0], [1], [0, 0, 1, 1], [], []>} : vector<16x256xf32>, vector<256x256xf32>, vector<16x256xf32> -> vector<16x256xf32>
    %c0_23 = arith.constant 0 : index
    %c0_24 = arith.constant 0 : index
    %31 = vector.load %arg10[%c0_23, %c0_24] : memref<1x256xf32, #tpu.memory_space<vmem>>, vector<1x256xf32>
    %32 = vector.broadcast %31 : vector<1x256xf32> to vector<16x256xf32>
    %33 = arith.addf %30, %32 : vector<16x256xf32>
    %cst_25 = arith.constant 0.000000e+00 : f32
    %34 = vector.broadcast %cst_25 : f32 to vector<16x256xf32>
    %35 = arith.maximumf %33, %34 : vector<16x256xf32>
    %c0_26 = arith.constant 0 : index
    %c0_27 = arith.constant 0 : index
    %36 = vector.load %arg11[%c0_26, %c0_27] : memref<256x128xf32, #tpu.memory_space<vmem>>, vector<256x128xf32>
    %cst_28 = arith.constant dense<0.000000e+00> : vector<16x128xf32>
    %37 = tpu.matmul %35, %36, %cst_28 {dimension_numbers = #tpu.dot_dimension_numbers<[1], [0], [0], [1], [0, 0, 1, 1], [], []>} : vector<16x256xf32>, vector<256x128xf32>, vector<16x128xf32> -> vector<16x128xf32>
    %c0_29 = arith.constant 0 : index
    %c0_30 = arith.constant 0 : index
    %38 = vector.load %arg12[%c0_29, %c0_30] : memref<1x128xf32, #tpu.memory_space<vmem>>, vector<1x128xf32>
    %39 = vector.broadcast %38 : vector<1x128xf32> to vector<16x128xf32>
    %40 = arith.addf %37, %39 : vector<16x128xf32>
    %c0_31 = arith.constant 0 : index
    %c0_32 = arith.constant 0 : index
    %41 = vector.load %arg13[%c0_31, %c0_32] : memref<16x128xf32, #tpu.memory_space<vmem>>, vector<16x128xf32>
    tpu.vector_store %arg13[%c0_31, %c0_32], %40 {strides = array<i32>} : memref<16x128xf32, #tpu.memory_space<vmem>>, vector<16x128xf32>,
    return
  }
  func.func @transform_0(%arg0: i32) -> (i32, i32) {
    %c0_i32 = arith.constant 0 : i32
    %c0_i32_0 = arith.constant 0 : i32
    return %arg0, %c0_i32 : i32, i32
  }
  func.func @transform_1(%arg0: i32) -> (i32, i32) {
    %c0_i32 = arith.constant 0 : i32
    %c0_i32_0 = arith.constant 0 : i32
    return %arg0, %c0_i32 : i32, i32
  }
  func.func @transform_2(%arg0: i32) -> (i32, i32) {
    %c0_i32 = arith.constant 0 : i32
    %c0_i32_0 = arith.constant 0 : i32
    %c0_i32_1 = arith.constant 0 : i32
    return %c0_i32, %c0_i32_0 : i32, i32
  }
  func.func @transform_3(%arg0: i32) -> (i32, i32) {
    %c0_i32 = arith.constant 0 : i32
    %c0_i32_0 = arith.constant 0 : i32
    %c0_i32_1 = arith.constant 0 : i32
    return %c0_i32, %c0_i32_0 : i32, i32
  }
  func.func @transform_4(%arg0: i32) -> (i32, i32) {
    %c0_i32 = arith.constant 0 : i32
    %c0_i32_0 = arith.constant 0 : i32
    %c0_i32_1 = arith.constant 0 : i32
    return %c0_i32, %c0_i32_0 : i32, i32
  }
  func.func @transform_5(%arg0: i32) -> (i32, i32) {
    %c0_i32 = arith.constant 0 : i32
    %c0_i32_0 = arith.constant 0 : i32
    %c0_i32_1 = arith.constant 0 : i32
    return %c0_i32, %c0_i32_0 : i32, i32
  }
  func.func @transform_6(%arg0: i32) -> (i32, i32) {
    %c0_i32 = arith.constant 0 : i32
    %c0_i32_0 = arith.constant 0 : i32
    %c0_i32_1 = arith.constant 0 : i32
    return %c0_i32, %c0_i32_0 : i32, i32
  }
  func.func @transform_7(%arg0: i32) -> (i32, i32) {
    %c0_i32 = arith.constant 0 : i32
    %c0_i32_0 = arith.constant 0 : i32
    %c0_i32_1 = arith.constant 0 : i32
    return %c0_i32, %c0_i32_0 : i32, i32
  }
  func.func @transform_8(%arg0: i32) -> (i32, i32) {
    %c0_i32 = arith.constant 0 : i32
    %c0_i32_0 = arith.constant 0 : i32
    %c0_i32_1 = arith.constant 0 : i32
    return %c0_i32, %c0_i32_0 : i32, i32
  }
  func.func @transform_9(%arg0: i32) -> (i32, i32) {
    %c0_i32 = arith.constant 0 : i32
    %c0_i32_0 = arith.constant 0 : i32
    %c0_i32_1 = arith.constant 0 : i32
    return %c0_i32, %c0_i32_0 : i32, i32
  }
  func.func @transform_10(%arg0: i32) -> (i32, i32) {
    %c0_i32 = arith.constant 0 : i32
    %c0_i32_0 = arith.constant 0 : i32
    %c0_i32_1 = arith.constant 0 : i32
    return %c0_i32, %c0_i32_0 : i32, i32
  }
  func.func @transform_11(%arg0: i32) -> (i32, i32) {
    %c0_i32 = arith.constant 0 : i32
    %c0_i32_0 = arith.constant 0 : i32
    %c0_i32_1 = arith.constant 0 : i32
    return %c0_i32, %c0_i32_0 : i32, i32
  }
  func.func @transform_12(%arg0: i32) -> (i32, i32) {
    %c0_i32 = arith.constant 0 : i32
    %c0_i32_0 = arith.constant 0 : i32
    return %arg0, %c0_i32 : i32, i32
  }
}

</mosaic_0001>

<llo_original>
// kernel: quantile_forward.1
$region0: #{quantile_forward.1}
  #allocation0 [shape = 'u32[]', space=smem, size = 0x4, offset = 0x4, fixed_abs, tag = 'smem constant byte address 0x4 - core index']
  #allocation1 [shape = 'u32[144,128]{1,0:T(1,128)}', space=vmem, size = 0x12000, scoped, tag = 'internal scratch']
  %s0 = inlined_call_operand.vmem [shape: f32[16,1], index: 0, kind: input, shape index: {}]
  %s1 = inlined_call_operand.hbm [shape: f32[16,16], index: 1, kind: input, shape index: {}]
  %s2 = inlined_call_operand.vmem [shape: f32[1,256], index: 2, kind: input, shape index: {}]
  %s3 = inlined_call_operand.hbm [shape: f32[1,256], index: 3, kind: input, shape index: {}]
  %s4 = inlined_call_operand.vmem [shape: f32[16,256], index: 4, kind: input, shape index: {}]
  %s5 = inlined_call_operand.vmem [shape: f32[1,256], index: 5, kind: input, shape index: {}]
  %s6 = inlined_call_operand.hbm [shape: f32[256,256], index: 6, kind: input, shape index: {}]
  %s7 = inlined_call_operand.vmem [shape: f32[1,256], index: 7, kind: input, shape index: {}]
  %s8 = inlined_call_operand.hbm [shape: f32[256,256], index: 8, kind: input, shape index: {}]
  %s9 = inlined_call_operand.vmem [shape: f32[1,256], index: 9, kind: input, shape index: {}]
  %s10 = inlined_call_operand.hbm [shape: f32[256,128], index: 10, kind: input, shape index: {}]
  %s11 = inlined_call_operand.vmem [shape: f32[1,128], index: 11, kind: input, shape index: {}]
  %s12 = inlined_call_operand.vmem [shape: f32[16,128], index: 12, kind: output, shape index: {}]
  %s13 = sld [smem:[#allocation0]]
  $region78: #{quantile_forward.1} parent=0
    _
  %s15 = ssub.s32 1, %s13
  %s16 = scalar_select 0, %s15, %s13
  $region1: #{quantile_forward.1} parent=0
    #allocation2 [shape = 'u8[8192]{0}', space=vmem, size = 0x2000, scoped, tag = 'input window, operand 1, single buffered']
    #allocation3 [shape = 's32[1]{0}', space=sflag, size = 0x4, scoped, tag = 'scoped memory for quantile_forward.1']
    #allocation4 [shape = 'u8[1024]{0}', space=vmem, size = 0x400, scoped, tag = 'input window, operand 3, single buffered']
    #allocation5 [shape = 's32[1]{0}', space=sflag, size = 0x4, scoped, tag = 'scoped memory for quantile_forward.1']
    #allocation6 [shape = 'u8[262144]{0}', space=vmem, size = 0x40000, scoped, tag = 'input window, operand 6, single buffered']
    #allocation7 [shape = 'u8[262144]{0}', space=vmem, size = 0x40000, scoped, tag = 'input window, operand 8, single buffered']
    #allocation8 [shape = 's32[1]{0}', space=sflag, size = 0x4, scoped, tag = 'scoped memory for quantile_forward.1']
    #allocation9 [shape = 'u8[131072]{0}', space=vmem, size = 0x20000, scoped, tag = 'input window, operand 10, single buffered']
    %17 = vsyncpa [#allocation3], 0
    %18 = vsyncpa [#allocation5], 0
    %19 = vsyncpa [#allocation8], 0
    // Predicated region
    $region2: #{quantile_forward.1} parent=1 // pred_check
      _
    $region3: #{quantile_forward.1} parent=1 // pred_check_branch
      %21 = sbr.rel (0) target = $region5
    $region4: #{quantile_forward.1} parent=1 // pred_region
      _
    $region5: #{quantile_forward.1} parent=1 // pred_fallthru
      _
    // Predicated region
    $region6: #{quantile_forward.1} parent=1 // pred_check
      _
    $region7: #{quantile_forward.1} parent=1 // pred_check_branch
      %23 = sbr.rel (0) target = $region9
    $region8: #{quantile_forward.1} parent=1 // pred_region
      %s25 = ssub.s32 256, 256
      %26 = vsyncadd [#allocation3], %s25
      %s27 = sshll.u32 [#allocation2], 4
      %s28 = int_to_ptr.vmem [resolvable:$true] %s27
      %33 = dma.hbm_to_vmem [thread:$0]  %s1, 256, %s28, [#allocation3], 128, 128, 8
    $region9: #{quantile_forward.1} parent=1 // pred_fallthru
      _
    // Predicated region
    $region10: #{quantile_forward.1} parent=1 // pred_check
      _
    $region11: #{quantile_forward.1} parent=1 // pred_check_branch
      %35 = sbr.rel (0) target = $region13
    $region12: #{quantile_forward.1} parent=1 // pred_region
      _
    $region13: #{quantile_forward.1} parent=1 // pred_fallthru
      _
    // Predicated region
    $region14: #{quantile_forward.1} parent=1 // pred_check
      _
    $region15: #{quantile_forward.1} parent=1 // pred_check_branch
      %37 = sbr.rel (0) target = $region17
    $region16: #{quantile_forward.1} parent=1 // pred_region
      %s39 = ssub.s32 32, 32
      %40 = vsyncadd [#allocation5], %s39
      %s42 = sshll.u32 [#allocation4], 4
      %s43 = int_to_ptr.vmem [resolvable:$true] %s42
      %45 = dma.hbm_to_vmem [thread:$0]  %s3, 32, %s43, [#allocation5]
    $region17: #{quantile_forward.1} parent=1 // pred_fallthru
      _
    // Predicated region
    $region18: #{quantile_forward.1} parent=1 // pred_check
      _
    $region19: #{quantile_forward.1} parent=1 // pred_check_branch
      %47 = sbr.rel (0) target = $region21
    $region20: #{quantile_forward.1} parent=1 // pred_region
      _
    $region21: #{quantile_forward.1} parent=1 // pred_fallthru
      _
    // Predicated region
    $region22: #{quantile_forward.1} parent=1 // pred_check
      _
    $region23: #{quantile_forward.1} parent=1 // pred_check_branch
      %49 = sbr.rel (0) target = $region25
    $region24: #{quantile_forward.1} parent=1 // pred_region
      _
    $region25: #{quantile_forward.1} parent=1 // pred_fallthru
      _
    // Predicated region
    $region26: #{quantile_forward.1} parent=1 // pred_check
      _
    $region27: #{quantile_forward.1} parent=1 // pred_check_branch
      %51 = sbr.rel (0) target = $region29
    $region28: #{quantile_forward.1} parent=1 // pred_region
      %s53 = ssub.s32 8192, 8192
      %54 = vsyncadd [#allocation5], %s53
      %s55 = sshll.u32 [#allocation6], 4
      %s56 = int_to_ptr.vmem [resolvable:$true] %s55
      %61 = dma.hbm_to_vmem [thread:$0]  %s6, 8192, %s56, [#allocation5], 256, 256, 16
    $region29: #{quantile_forward.1} parent=1 // pred_fallthru
      _
    // Predicated region
    $region30: #{quantile_forward.1} parent=1 // pred_check
      _
    $region31: #{quantile_forward.1} parent=1 // pred_check_branch
      %63 = sbr.rel (0) target = $region33
    $region32: #{quantile_forward.1} parent=1 // pred_region
      _
    $region33: #{quantile_forward.1} parent=1 // pred_fallthru
      _
    // Predicated region
    $region34: #{quantile_forward.1} parent=1 // pred_check
      _
    $region35: #{quantile_forward.1} parent=1 // pred_check_branch
      %65 = sbr.rel (0) target = $region37
    $region36: #{quantile_forward.1} parent=1 // pred_region
      %s67 = ssub.s32 8192, 8192
      %68 = vsyncadd [#allocation8], %s67
      %s69 = sshll.u32 [#allocation7], 4
      %s70 = int_to_ptr.vmem [resolvable:$true] %s69
      %75 = dma.hbm_to_vmem [thread:$0]  %s8, 8192, %s70, [#allocation8], 256, 256, 16
    $region37: #{quantile_forward.1} parent=1 // pred_fallthru
      _
    // Predicated region
    $region38: #{quantile_forward.1} parent=1 // pred_check
      _
    $region39: #{quantile_forward.1} parent=1 // pred_check_branch
      %77 = sbr.rel (0) target = $region41
    $region40: #{quantile_forward.1} parent=1 // pred_region
      _
    $region41: #{quantile_forward.1} parent=1 // pred_fallthru
      _
    // Predicated region
    $region42: #{quantile_forward.1} parent=1 // pred_check
      _
    $region43: #{quantile_forward.1} parent=1 // pred_check_branch
      %79 = sbr.rel (0) target = $region45
    $region44: #{quantile_forward.1} parent=1 // pred_region
      %s81 = ssub.s32 4096, 4096
      %82 = vsyncadd [#allocation8], %s81
      %s83 = sshll.u32 [#allocation9], 4
      %s84 = int_to_ptr.vmem [resolvable:$true] %s83
      %89 = dma.hbm_to_vmem [thread:$0]  %s10, 4096, %s84, [#allocation8], 128, 128, 8
    $region45: #{quantile_forward.1} parent=1 // pred_fallthru
      _
    // Predicated region
    $region46: #{quantile_forward.1} parent=1 // pred_check
      _
    $region47: #{quantile_forward.1} parent=1 // pred_check_branch
      %91 = sbr.rel (0) target = $region49
    $region48: #{quantile_forward.1} parent=1 // pred_region
      _
    $region49: #{quantile_forward.1} parent=1 // pred_fallthru
      _
    // Predicated region
    $region50: #{quantile_forward.1} parent=1 // pred_check
      _
    $region51: #{quantile_forward.1} parent=1 // pred_check_branch
      %93 = sbr.rel (0) target = $region53
    $region52: #{quantile_forward.1} parent=1 // pred_region
      %94 = dma.done [#allocation3], 256
    $region53: #{quantile_forward.1} parent=1 // pred_fallthru
      _
    // Predicated region
    $region54: #{quantile_forward.1} parent=1 // pred_check
      _
    $region55: #{quantile_forward.1} parent=1 // pred_check_branch
      %96 = sbr.rel (0) target = $region57
    $region56: #{quantile_forward.1} parent=1 // pred_region
      %97 = dma.done [#allocation5], 32
    $region57: #{quantile_forward.1} parent=1 // pred_fallthru
      _
    // Predicated region
    $region58: #{quantile_forward.1} parent=1 // pred_check
      _
    $region59: #{quantile_forward.1} parent=1 // pred_check_branch
      %99 = sbr.rel (0) target = $region61
    $region60: #{quantile_forward.1} parent=1 // pred_region
      %100 = dma.done [#allocation5], 8192
    $region61: #{quantile_forward.1} parent=1 // pred_fallthru
      _
    // Predicated region
    $region62: #{quantile_forward.1} parent=1 // pred_check
      _
    $region63: #{quantile_forward.1} parent=1 // pred_check_branch
      %102 = sbr.rel (0) target = $region65
    $region64: #{quantile_forward.1} parent=1 // pred_region
      %103 = dma.done [#allocation8], 8192
    $region65: #{quantile_forward.1} parent=1 // pred_fallthru
      _
    // Predicated region
    $region66: #{quantile_forward.1} parent=1 // pred_check
      _
    $region67: #{quantile_forward.1} parent=1 // pred_check_branch
      %105 = sbr.rel (0) target = $region69
    $region68: #{quantile_forward.1} parent=1 // pred_region
      %106 = dma.done [#allocation8], 4096
    $region69: #{quantile_forward.1} parent=1 // pred_fallthru
      _
    %v107 = vld [vmem:[%s0] sm:$0xff]
    %v108 = vld [vmem:[%s0 + $0x8] sm:$0xff]
    %v109 = vmul.f32 %v107, 3.1416
    %v110 = vmul.f32 %v108, 3.1416
    %v111 = vand.u32 2147483647, %v109
    %vm112 = vcmp.le.f32.partialorder %v111, 0.7853982
    %vm113 = vcmp.lt.s32.totalorder %v109, 0
    %v114 = vand.u32 %v109, 2139095040
    %v115 = vshrl.u32 %v114, 23
    %v116 = vsub.s32 %v115, 127
    %v117 = vand.u32 2147483647, %v109
    %v118 = vand.u32 %v117, 8388607
    %v119 = vor.u32 %v118, 8388608
    %v120 = vsub.s32 0, %v119
    %v121 = vadd.s32 %v116, 1
    %vm122 = vcmp.gt.s32.totalorder %v121, 0
    %v123 = vsel %vm122, %v121, 0
    %v124 = vshrl.u32 %v123, 5
    %v125 = vand.u32 %v123, 31
    %v126 = vsub.s32 32, %v125
    %v127 = vshrl.u32 683565275, %v126
    %v128 = vshll.u32 683565275, %v125
    %v129 = vshrl.u32 2475754826, %v126
    %v130 = vor.u32 %v128, %v129
    %v131 = vshll.u32 2475754826, %v125
    %v132 = vshrl.u32 2131351028, %v126
    %v133 = vor.u32 %v131, %v132
    %v134 = vshll.u32 2131351028, %v125
    %v135 = vshrl.u32 2102212464, %v126
    %v136 = vor.u32 %v134, %v135
    %v137 = vshll.u32 2102212464, %v125
    %v138 = vshrl.u32 920167782, %v126
    %v139 = vor.u32 %v137, %v138
    %v140 = vshll.u32 920167782, %v125
    %v141 = vshrl.u32 1326507024, %v126
    %v142 = vor.u32 %v140, %v141
    %vm143 = vcmp.lt.s32.totalorder %v124, 1
    %vm144 = vcmp.lt.s32.totalorder %v124, 2
    %vm145 = vcmp.lt.s32.totalorder %v124, 3
    %vm146 = vcmp.lt.s32.totalorder %v124, 4
    %v147 = vsel %vm143, %v127, %v130
    %v148 = vsel %vm146, %v136, 2102212464
    %v149 = vsel %vm145, %v133, %v148
    %v150 = vsel %vm144, %v147, %v149
    %v151 = vsel %vm143, %v130, %v133
    %v152 = vsel %vm146, %v139, 920167782
    %v153 = vsel %vm145, %v136, %v152
    %v154 = vsel %vm144, %v151, %v153
    %v155 = vsel %vm143, %v133, %v136
    %v156 = vsel %vm146, %v142, 1326507024
    %v157 = vsel %vm145, %v139, %v156
    %v158 = vsel %vm144, %v155, %v157
    %v159 = vshll.u32 %v119, 8
    %v160 = vmul.u32.u64.compose %v159, %v158
    %v161 = vextract.low.u32 %v160
    %v162 = vextract.high.u32 %v160
    %v163 = vmul.u32.u64.compose %v159, %v154
    %v164 = vextract.low.u32 %v163
    %v165 = vextract.high.u32 %v163
    %v166 = vmul.u32 %v159, %v150
    %v167 = vadd.s32 %v162, %v164
    %vm168 = vc.u32 %v162, %v164
    %v169 = vadd.s32 %v165, 1
    %v170 = vsel %vm168, %v169, %v165
    %v171 = vadd.s32 %v166, %v170
    %v172 = vadd.s32 %v171, 536870912
    %v173 = vshrl.u32 %v172, 30
    %v174 = vshll.u32 %v173, 30
    %v175 = vsub.s32 %v171, %v174
    %vm176 = vcmp.lt.s32.totalorder %v175, 0
    %v177 = vsub.s32 0, %v175
    %v178 = vsel %vm176, %v177, %v175
    %v179 = vclz %v178
    %v180 = vsub.s32 %v179, 2
    %vm181 = vcmp.gt.s32.totalorder 0, %v180
    %v182 = vsel %vm181, 0, %v180
    %v183 = vsub.s32 32, %v182
    %v184 = vshll.u32 %v175, %v182
    %v185 = vshrl.u32 %v167, %v183
    %v186 = vor.u32 %v184, %v185
    %v187 = vsub.s32 4294967266, %v182
    %v188 = vadd.s32 %v187, 127
    %v189 = vshll.u32 %v188, 23
    %v190 = vor.u32 4788187, %v189
    %v191 = vand.u32 2147483647, %v190
    %v193 = vcvt.s32.f32 %v186
    %v194 = vmul.f32 %v193, %v191
    %v195 = vxor.u32 %v194, 2147483648
    %v196 = vsel %vm113, %v195, %v194
    %v197 = vsub.s32 4, %v173
    %v198 = vsel %vm113, %v197, %v173
    %v199 = vsel %vm112, %v109, %v196
    %v200 = vsel %vm112, 0, %v198
    %v201 = vcosq.f32.pop %v199
    %v202 = vsinq.f32.pop %v199
    %vm203 = vweird.f32 %v109
    %v204 = vand.u32 %v200, 3
    %vm205 = vcmp.lt.s32.totalorder %v204, 2
    %vm206 = vcmp.eq.s32.totalorder %v204, 0
    %v207 = vxor.u32 %v202, 2147483648
    %v208 = vsel %vm206, %v201, %v207
    %vm209 = vcmp.eq.s32.totalorder %v204, 2
    %v210 = vxor.u32 %v201, 2147483648
    %v211 = vsel %vm209, %v210, %v202
    %v212 = vsel %vm205, %v208, %v211
    %v213 = vsel %vm203, nan, %v212
    %v214 = vand.u32 2147483647, %v110
    %vm215 = vcmp.le.f32.partialorder %v214, 0.7853982
    %vm216 = vcmp.lt.s32.totalorder %v110, 0
    %v217 = vand.u32 %v110, 2139095040
    %v218 = vshrl.u32 %v217, 23
    %v219 = vsub.s32 %v218, 127
    %v220 = vand.u32 2147483647, %v110
    %v221 = vand.u32 %v220, 8388607
    %v222 = vor.u32 %v221, 8388608
    %v223 = vsub.s32 0, %v222
    %v224 = vadd.s32 %v219, 1
    %vm225 = vcmp.gt.s32.totalorder %v224, 0
    %v226 = vsel %vm225, %v224, 0
    %v227 = vshrl.u32 %v226, 5
    %v228 = vand.u32 %v226, 31
    %v229 = vsub.s32 32, %v228
    %v230 = vshrl.u32 683565275, %v229
    %v231 = vshll.u32 683565275, %v228
    %v232 = vshrl.u32 2475754826, %v229
    %v233 = vor.u32 %v231, %v232
    %v234 = vshll.u32 2475754826, %v228
    %v235 = vshrl.u32 2131351028, %v229
    %v236 = vor.u32 %v234, %v235
    %v237 = vshll.u32 2131351028, %v228
    %v238 = vshrl.u32 2102212464, %v229
    %v239 = vor.u32 %v237, %v238
    %v240 = vshll.u32 2102212464, %v228
    %v241 = vshrl.u32 920167782, %v229
    %v242 = vor.u32 %v240, %v241
    %v243 = vshll.u32 920167782, %v228
    %v244 = vshrl.u32 1326507024, %v229
    %v245 = vor.u32 %v243, %v244
    %vm246 = vcmp.lt.s32.totalorder %v227, 1
    %vm247 = vcmp.lt.s32.totalorder %v227, 2
    %vm248 = vcmp.lt.s32.totalorder %v227, 3
    %vm249 = vcmp.lt.s32.totalorder %v227, 4
    %v250 = vsel %vm246, %v230, %v233
    %v251 = vsel %vm249, %v239, 2102212464
    %v252 = vsel %vm248, %v236, %v251
    %v253 = vsel %vm247, %v250, %v252
    %v254 = vsel %vm246, %v233, %v236
    %v255 = vsel %vm249, %v242, 920167782
    %v256 = vsel %vm248, %v239, %v255
    %v257 = vsel %vm247, %v254, %v256
    %v258 = vsel %vm246, %v236, %v239
    %v259 = vsel %vm249, %v245, 1326507024
    %v260 = vsel %vm248, %v242, %v259
    %v261 = vsel %vm247, %v258, %v260
    %v262 = vshll.u32 %v222, 8
    %v263 = vmul.u32.u64.compose %v262, %v261
    %v264 = vextract.low.u32 %v263
    %v265 = vextract.high.u32 %v263
    %v266 = vmul.u32.u64.compose %v262, %v257
    %v267 = vextract.low.u32 %v266
    %v268 = vextract.high.u32 %v266
    %v269 = vmul.u32 %v262, %v253
    %v270 = vadd.s32 %v265, %v267
    %vm271 = vc.u32 %v265, %v267
    %v272 = vadd.s32 %v268, 1
    %v273 = vsel %vm271, %v272, %v268
    %v274 = vadd.s32 %v269, %v273
    %v275 = vadd.s32 %v274, 536870912
    %v276 = vshrl.u32 %v275, 30
    %v277 = vshll.u32 %v276, 30
    %v278 = vsub.s32 %v274, %v277
    %vm279 = vcmp.lt.s32.totalorder %v278, 0
    %v280 = vsub.s32 0, %v278
    %v281 = vsel %vm279, %v280, %v278
    %v282 = vclz %v281
    %v283 = vsub.s32 %v282, 2
    %vm284 = vcmp.gt.s32.totalorder 0, %v283
    %v285 = vsel %vm284, 0, %v283
    %v286 = vsub.s32 32, %v285
    %v287 = vshll.u32 %v278, %v285
    %v288 = vshrl.u32 %v270, %v286
    %v289 = vor.u32 %v287, %v288
    %v290 = vsub.s32 4294967266, %v285
    %v291 = vadd.s32 %v290, 127
    %v292 = vshll.u32 %v291, 23
    %v293 = vor.u32 4788187, %v292
    %v294 = vand.u32 2147483647, %v293
    %v296 = vcvt.s32.f32 %v289
    %v297 = vmul.f32 %v296, %v294
    %v298 = vxor.u32 %v297, 2147483648
    %v299 = vsel %vm216, %v298, %v297
    %v300 = vsub.s32 4, %v276
    %v301 = vsel %vm216, %v300, %v276
    %v302 = vsel %vm215, %v110, %v299
    %v303 = vsel %vm215, 0, %v301
    %v304 = vcosq.f32.pop %v302
    %v305 = vsinq.f32.pop %v302
    %vm306 = vweird.f32 %v110
    %v307 = vand.u32 %v303, 3
    %vm308 = vcmp.lt.s32.totalorder %v307, 2
    %vm309 = vcmp.eq.s32.totalorder %v307, 0
    %v310 = vxor.u32 %v305, 2147483648
    %v311 = vsel %vm309, %v304, %v310
    %vm312 = vcmp.eq.s32.totalorder %v307, 2
    %v313 = vxor.u32 %v304, 2147483648
    %v314 = vsel %vm312, %v313, %v305
    %v315 = vsel %vm308, %v311, %v314
    %v316 = vsel %vm306, nan, %v315
    %v317 = vld [vmem:[%s2] sm:$0x3]
    %319 = vset.pattern.permute.xlu0 0
    %320 = vperm.xlu0 %319, %v213
    %v321 = vpop.permute.xlu0 %320
    %324 = vset.pattern.permute.xlu0 0
    %325 = vperm.xlu0 %324, %v316
    %v326 = vpop.permute.xlu0 %325
    %v329 = vlaneseq
    %v330 = vshrl.u32 %v329, 7
    %v331 = vsub.s32 0, %v330
    %v332 = vrot.slane %v317, %v331
    %v333 = vlaneseq
    %v334 = vshrl.u32 %v333, 7
    %v335 = vsub.s32 1, %v334
    %v336 = vrot.slane %v317, %v335
    %v339 = vmul.f32 %v321, %v332
    %v340 = vmul.f32 %v321, %v336
    %v341 = vmul.f32 %v326, %v332
    %v342 = vmul.f32 %v326, %v336
    %v343 = vld [vmem:[#allocation4] sm:$0x3]
    %v345 = vlaneseq
    %v346 = vshrl.u32 %v345, 7
    %v347 = vsub.s32 0, %v346
    %v348 = vrot.slane %v343, %v347
    %v349 = vlaneseq
    %v350 = vshrl.u32 %v349, 7
    %v351 = vsub.s32 1, %v350
    %v352 = vrot.slane %v343, %v351
    %v355 = vadd.f32 %v339, %v348
    %v356 = vadd.f32 %v340, %v352
    %v357 = vadd.f32 %v341, %v348
    %v358 = vadd.f32 %v342, %v352
    %v359 = vmax.f32 %v355, 0.0
    %v360 = vmax.f32 %v356, 0.0
    %v361 = vmax.f32 %v357, 0.0
    %v362 = vmax.f32 %v358, 0.0
    %v363 = vld [vmem:[#allocation2] sm:$0xff]
    %v364 = vld [vmem:[#allocation2 + $0x8] sm:$0xff]
    %v365 = vld [vmem:[%s4] sm:$0xff]
    %v366 = vld [vmem:[%s4 + $0x8] sm:$0xff]
    %v367 = vld [vmem:[%s4 + $0x10] sm:$0xff]
    %v368 = vld [vmem:[%s4 + $0x18] sm:$0xff]
    %v369 = vld [vmem:[%s5] sm:$0x3]
    %v371 = vlaneseq
    %v372 = vshrl.u32 %v371, 7
    %v373 = vsub.s32 0, %v372
    %v374 = vrot.slane %v369, %v373
    %v375 = vlaneseq
    %v376 = vshrl.u32 %v375, 7
    %v377 = vsub.s32 1, %v376
    %v378 = vrot.slane %v369, %v377
    %vm381 = vcmask 130048
    %v383 = vsel %vm381, %v363, 0
    %v386 = vsel %vm381, %v364, 0
    %388 = vmatprep.subr.mxu0 %v366
    %389 = vmatpush1.msra.mxu0 %v365
    %390 = vmatprep.subr.mxu0 %v368
    %391 = vmatpush1.msra.mxu0 %v367
    %392 = vmatprep.subr.mxu0 0.0
    %393 = vmatpush1.msra.mxu0 0.0
    %394 = vmatprep.subr.mxu0 0.0
    %395 = vmatpush1.msra.mxu0 0.0
    %396 = vmatprep.subr.mxu0 0.0
    %397 = vmatpush1.msra.mxu0 0.0
    %398 = vmatprep.subr.mxu0 0.0
    %399 = vmatpush1.msra.mxu0 0.0
    %400 = vmatprep.subr.mxu0 0.0
    %401 = vmatpush1.msra.mxu0 0.0
    %402 = vmatprep.subr.mxu0 0.0
    %403 = vmatpush1.msra.mxu0 0.0
    %404 = vmatprep.subr.mxu0 0.0
    %405 = vmatpush1.msra.mxu0 0.0
    %406 = vmatprep.subr.mxu0 0.0
    %407 = vmatpush1.msra.mxu0 0.0
    %408 = vmatprep.subr.mxu0 0.0
    %409 = vmatpush1.msra.mxu0 0.0
    %410 = vmatprep.subr.mxu0 0.0
    %411 = vmatpush1.msra.mxu0 0.0
    %412 = vmatprep.subr.mxu0 0.0
    %413 = vmatpush1.msra.mxu0 0.0
    %414 = vmatprep.subr.mxu0 0.0
    %415 = vmatpush1.msra.mxu0 0.0
    %416 = vmatprep.subr.mxu0 0.0
    %417 = vmatpush1.msra.mxu0 0.0
    %418 = vmatprep.subr.mxu0 0.0
    %419 = vmatpush1.msra.mxu0 0.0
    %420 = vmatprep.subr.mxu0 0.0
    %421 = vmatpush1.msra.mxu0 0.0
    %422 = vmatprep.subr.mxu0 0.0
    %423 = vmatpush1.msra.mxu0 0.0
    %424 = vmatprep.subr.mxu0 0.0
    %425 = vmatpush1.msra.mxu0 0.0
    %426 = vmatprep.subr.mxu0 0.0
    %427 = vmatpush1.msra.mxu0 0.0
    %428 = vmatprep.subr.mxu0 0.0
    %429 = vmatpush1.msra.mxu0 0.0
    %430 = vmatprep.subr.mxu0 0.0
    %431 = vmatpush1.msra.mxu0 0.0
    %432 = vmatprep.subr.mxu0 0.0
    %433 = vmatpush1.msra.mxu0 0.0
    %434 = vmatprep.subr.mxu0 0.0
    %435 = vmatpush1.msra.mxu0 0.0
    %436 = vmatprep.subr.mxu0 0.0
    %437 = vmatpush1.msra.mxu0 0.0
    %438 = vmatprep.subr.mxu0 0.0
    %439 = vmatpush1.msra.mxu0 0.0
    %440 = vmatprep.subr.mxu0 0.0
    %441 = vmatpush1.msra.mxu0 0.0
    %442 = vmatprep.subr.mxu0 0.0
    %443 = vmatpush1.msra.mxu0 0.0
    %444 = vmatprep.subr.mxu0 0.0
    %445 = vmatpush1.msra.mxu0 0.0
    %446 = vmatprep.subr.mxu0 0.0
    %447 = vmatpush1.msra.mxu0 0.0
    %448 = vmatprep.subr.mxu0 0.0
    %449 = vmatpush1.msra.mxu0 0.0
    %450 = vmatprep.subr.mxu0 0.0
    %451 = vmatpush1.msra.mxu0 0.0
    %452 = vmatprep.mubr.f32.mxu0 0.0
    %453 = vmatmul.mubr.f32.gmra.mrb[0].mxu0 %v383
    %v454 = vpop.f32.mrb[0].mxu0
    %v455 = vadd.f32 %v374, %v454
    %v456 = vpop.f32.mrb[0].mxu0
    %v457 = vadd.f32 %v378, %v456
    %458 = vmatprep.mubr.f32.mxu0 0.0
    %459 = vmatmul.mubr.f32.gmra.mrb[0].mxu0 %v386
    %v460 = vpop.f32.mrb[0].mxu0
    %v461 = vadd.f32 %v374, %v460
    %v462 = vpop.f32.mrb[0].mxu0
    %v463 = vadd.f32 %v378, %v462
    %464 = vdwg.mxu0
    %v465 = vmax.f32 %v455, 0.0
    %v466 = vmax.f32 %v457, 0.0
    %v467 = vmax.f32 %v461, 0.0
    %v468 = vmax.f32 %v463, 0.0
    %v469 = vmul.f32 %v465, %v359
    %v470 = vmul.f32 %v466, %v360
    %v471 = vmul.f32 %v467, %v361
    %v472 = vmul.f32 %v468, %v362
    %v473 = vld [vmem:[#allocation6] sm:$0xff]
    %v474 = vld [vmem:[#allocation6 + $0x8] sm:$0xff]
    %v475 = vld [vmem:[#allocation6 + $0x10] sm:$0xff]
    %v476 = vld [vmem:[#allocation6 + $0x18] sm:$0xff]
    %v477 = vld [vmem:[#allocation6 + $0x20] sm:$0xff]
    %v478 = vld [vmem:[#allocation6 + $0x28] sm:$0xff]
    %v479 = vld [vmem:[#allocation6 + $0x30] sm:$0xff]
    %v480 = vld [vmem:[#allocation6 + $0x38] sm:$0xff]
    %v481 = vld [vmem:[#allocation6 + $0x40] sm:$0xff]
    %v482 = vld [vmem:[#allocation6 + $0x48] sm:$0xff]
    %v483 = vld [vmem:[#allocation6 + $0x50] sm:$0xff]
    %v484 = vld [vmem:[#allocation6 + $0x58] sm:$0xff]
    %v485 = vld [vmem:[#allocation6 + $0x60] sm:$0xff]
    %v486 = vld [vmem:[#allocation6 + $0x68] sm:$0xff]
    %v487 = vld [vmem:[#allocation6 + $0x70] sm:$0xff]
    %v488 = vld [vmem:[#allocation6 + $0x78] sm:$0xff]
    %v489 = vld [vmem:[#allocation6 + $0x80] sm:$0xff]
    %v490 = vld [vmem:[#allocation6 + $0x88] sm:$0xff]
    %v491 = vld [vmem:[#allocation6 + $0x90] sm:$0xff]
    %v492 = vld [vmem:[#allocation6 + $0x98] sm:$0xff]
    %v493 = vld [vmem:[#allocation6 + $0xa0] sm:$0xff]
    %v494 = vld [vmem:[#allocation6 + $0xa8] sm:$0xff]
    %v495 = vld [vmem:[#allocation6 + $0xb0] sm:$0xff]
    %v496 = vld [vmem:[#allocation6 + $0xb8] sm:$0xff]
    %v497 = vld [vmem:[#allocation6 + $0xc0] sm:$0xff]
    %v498 = vld [vmem:[#allocation6 + $0xc8] sm:$0xff]
    %v499 = vld [vmem:[#allocation6 + $0xd0] sm:$0xff]
    %v500 = vld [vmem:[#allocation6 + $0xd8] sm:$0xff]
    %v501 = vld [vmem:[#allocation6 + $0xe0] sm:$0xff]
    %v502 = vld [vmem:[#allocation6 + $0xe8] sm:$0xff]
    %v503 = vld [vmem:[#allocation6 + $0xf0] sm:$0xff]
    %v504 = vld [vmem:[#allocation6 + $0xf8] sm:$0xff]
    %v505 = vld [vmem:[#allocation6 + $0x100] sm:$0xff]
    %v506 = vld [vmem:[#allocation6 + $0x108] sm:$0xff]
    %v507 = vld [vmem:[#allocation6 + $0x110] sm:$0xff]
    %v508 = vld [vmem:[#allocation6 + $0x118] sm:$0xff]
    %v509 = vld [vmem:[#allocation6 + $0x120] sm:$0xff]
    %v510 = vld [vmem:[#allocation6 + $0x128] sm:$0xff]
    %v511 = vld [vmem:[#allocation6 + $0x130] sm:$0xff]
    %v512 = vld [vmem:[#allocation6 + $0x138] sm:$0xff]
    %v513 = vld [vmem:[#allocation6 + $0x140] sm:$0xff]
    %v514 = vld [vmem:[#allocation6 + $0x148] sm:$0xff]
    %v515 = vld [vmem:[#allocation6 + $0x150] sm:$0xff]
    %v516 = vld [vmem:[#allocation6 + $0x158] sm:$0xff]
    %v517 = vld [vmem:[#allocation6 + $0x160] sm:$0xff]
    %v518 = vld [vmem:[#allocation6 + $0x168] sm:$0xff]
    %v519 = vld [vmem:[#allocation6 + $0x170] sm:$0xff]
    %v520 = vld [vmem:[#allocation6 + $0x178] sm:$0xff]
    %v521 = vld [vmem:[#allocation6 + $0x180] sm:$0xff]
    %v522 = vld [vmem:[#allocation6 + $0x188] sm:$0xff]
    %v523 = vld [vmem:[#allocation6 + $0x190] sm:$0xff]
    %v524 = vld [vmem:[#allocation6 + $0x198] sm:$0xff]
    %v525 = vld [vmem:[#allocation6 + $0x1a0] sm:$0xff]
    %v526 = vld [vmem:[#allocation6 + $0x1a8] sm:$0xff]
    %v527 = vld [vmem:[#allocation6 + $0x1b0] sm:$0xff]
    %v528 = vld [vmem:[#allocation6 + $0x1b8] sm:$0xff]
    %v529 = vld [vmem:[#allocation6 + $0x1c0] sm:$0xff]
    %v530 = vld [vmem:[#allocation6 + $0x1c8] sm:$0xff]
    %v531 = vld [vmem:[#allocation6 + $0x1d0] sm:$0xff]
    %v532 = vld [vmem:[#allocation6 + $0x1d8] sm:$0xff]
    %v533 = vld [vmem:[#allocation6 + $0x1e0] sm:$0xff]
    %v534 = vld [vmem:[#allocation6 + $0x1e8] sm:$0xff]
    %v535 = vld [vmem:[#allocation6 + $0x1f0] sm:$0xff]
    %v536 = vld [vmem:[#allocation6 + $0x1f8] sm:$0xff]
    %v537 = vld [vmem:[%s7] sm:$0x3]
    %v539 = vlaneseq
    %v540 = vshrl.u32 %v539, 7
    %v541 = vsub.s32 0, %v540
    %v542 = vrot.slane %v537, %v541
    %v543 = vlaneseq
    %v544 = vshrl.u32 %v543, 7
    %v545 = vsub.s32 1, %v544
    %v546 = vrot.slane %v537, %v545
    %549 = vmatprep.subr.mxu0 %v474
    %550 = vmatpush1.msra.mxu0 %v473
    %551 = vmatprep.subr.mxu0 %v476
    %552 = vmatpush1.msra.mxu0 %v475
    %553 = vmatprep.subr.mxu0 %v478
    %554 = vmatpush1.msra.mxu0 %v477
    %555 = vmatprep.subr.mxu0 %v480
    %556 = vmatpush1.msra.mxu0 %v479
    %557 = vmatprep.subr.mxu0 %v482
    %558 = vmatpush1.msra.mxu0 %v481
    %559 = vmatprep.subr.mxu0 %v484
    %560 = vmatpush1.msra.mxu0 %v483
    %561 = vmatprep.subr.mxu0 %v486
    %562 = vmatpush1.msra.mxu0 %v485
    %563 = vmatprep.subr.mxu0 %v488
    %564 = vmatpush1.msra.mxu0 %v487
    %565 = vmatprep.subr.mxu0 %v490
    %566 = vmatpush1.msra.mxu0 %v489
    %567 = vmatprep.subr.mxu0 %v492
    %568 = vmatpush1.msra.mxu0 %v491
    %569 = vmatprep.subr.mxu0 %v494
    %570 = vmatpush1.msra.mxu0 %v493
    %571 = vmatprep.subr.mxu0 %v496
    %572 = vmatpush1.msra.mxu0 %v495
    %573 = vmatprep.subr.mxu0 %v498
    %574 = vmatpush1.msra.mxu0 %v497
    %575 = vmatprep.subr.mxu0 %v500
    %576 = vmatpush1.msra.mxu0 %v499
    %577 = vmatprep.subr.mxu0 %v502
    %578 = vmatpush1.msra.mxu0 %v501
    %579 = vmatprep.subr.mxu0 %v504
    %580 = vmatpush1.msra.mxu0 %v503
    %581 = vmatprep.subr.mxu0 %v506
    %582 = vmatpush1.msra.mxu0 %v505
    %583 = vmatprep.subr.mxu0 %v508
    %584 = vmatpush1.msra.mxu0 %v507
    %585 = vmatprep.subr.mxu0 %v510
    %586 = vmatpush1.msra.mxu0 %v509
    %587 = vmatprep.subr.mxu0 %v512
    %588 = vmatpush1.msra.mxu0 %v511
    %589 = vmatprep.subr.mxu0 %v514
    %590 = vmatpush1.msra.mxu0 %v513
    %591 = vmatprep.subr.mxu0 %v516
    %592 = vmatpush1.msra.mxu0 %v515
    %593 = vmatprep.subr.mxu0 %v518
    %594 = vmatpush1.msra.mxu0 %v517
    %595 = vmatprep.subr.mxu0 %v520
    %596 = vmatpush1.msra.mxu0 %v519
    %597 = vmatprep.subr.mxu0 %v522
    %598 = vmatpush1.msra.mxu0 %v521
    %599 = vmatprep.subr.mxu0 %v524
    %600 = vmatpush1.msra.mxu0 %v523
    %601 = vmatprep.subr.mxu0 %v526
    %602 = vmatpush1.msra.mxu0 %v525
    %603 = vmatprep.subr.mxu0 %v528
    %604 = vmatpush1.msra.mxu0 %v527
    %605 = vmatprep.subr.mxu0 %v530
    %606 = vmatpush1.msra.mxu0 %v529
    %607 = vmatprep.subr.mxu0 %v532
    %608 = vmatpush1.msra.mxu0 %v531
    %609 = vmatprep.subr.mxu0 %v534
    %610 = vmatpush1.msra.mxu0 %v533
    %611 = vmatprep.subr.mxu0 %v536
    %612 = vmatpush1.msra.mxu0 %v535
    %613 = vmatprep.mubr.f32.mxu0 %v470
    %614 = vmatmul.mubr.f32.gmra.mrb[0].mxu0 %v469
    %v615 = vpop.f32.mrb[0].mxu0
    %v616 = vadd.f32 %v542, %v615
    %v617 = vpop.f32.mrb[0].mxu0
    %v618 = vadd.f32 %v546, %v617
    %619 = vmatprep.mubr.f32.mxu0 %v472
    %620 = vmatmul.mubr.f32.gmra.mrb[0].mxu0 %v471
    %v621 = vpop.f32.mrb[0].mxu0
    %v622 = vadd.f32 %v542, %v621
    %v623 = vpop.f32.mrb[0].mxu0
    %v624 = vadd.f32 %v546, %v623
    %625 = vdwg.mxu0
    %v626 = vmax.f32 %v616, 0.0
    %v627 = vmax.f32 %v618, 0.0
    %v628 = vmax.f32 %v622, 0.0
    %v629 = vmax.f32 %v624, 0.0
    %v630 = vld [vmem:[#allocation7] sm:$0xff]
    %v631 = vld [vmem:[#allocation7 + $0x8] sm:$0xff]
    %v632 = vld [vmem:[#allocation7 + $0x10] sm:$0xff]
    %v633 = vld [vmem:[#allocation7 + $0x18] sm:$0xff]
    %v634 = vld [vmem:[#allocation7 + $0x20] sm:$0xff]
    %v635 = vld [vmem:[#allocation7 + $0x28] sm:$0xff]
    %v636 = vld [vmem:[#allocation7 + $0x30] sm:$0xff]
    %v637 = vld [vmem:[#allocation7 + $0x38] sm:$0xff]
    %v638 = vld [vmem:[#allocation7 + $0x40] sm:$0xff]
    %v639 = vld [vmem:[#allocation7 + $0x48] sm:$0xff]
    %v640 = vld [vmem:[#allocation7 + $0x50] sm:$0xff]
    %v641 = vld [vmem:[#allocation7 + $0x58] sm:$0xff]
    %v642 = vld [vmem:[#allocation7 + $0x60] sm:$0xff]
    %v643 = vld [vmem:[#allocation7 + $0x68] sm:$0xff]
    %v644 = vld [vmem:[#allocation7 + $0x70] sm:$0xff]
    %v645 = vld [vmem:[#allocation7 + $0x78] sm:$0xff]
    %v646 = vld [vmem:[#allocation7 + $0x80] sm:$0xff]
    %v647 = vld [vmem:[#allocation7 + $0x88] sm:$0xff]
    %v648 = vld [vmem:[#allocation7 + $0x90] sm:$0xff]
    %v649 = vld [vmem:[#allocation7 + $0x98] sm:$0xff]
    %v650 = vld [vmem:[#allocation7 + $0xa0] sm:$0xff]
    %v651 = vld [vmem:[#allocation7 + $0xa8] sm:$0xff]
    %v652 = vld [vmem:[#allocation7 + $0xb0] sm:$0xff]
    %v653 = vld [vmem:[#allocation7 + $0xb8] sm:$0xff]
    %v654 = vld [vmem:[#allocation7 + $0xc0] sm:$0xff]
    %v655 = vld [vmem:[#allocation7 + $0xc8] sm:$0xff]
    %v656 = vld [vmem:[#allocation7 + $0xd0] sm:$0xff]
    %v657 = vld [vmem:[#allocation7 + $0xd8] sm:$0xff]
    %v658 = vld [vmem:[#allocation7 + $0xe0] sm:$0xff]
    %v659 = vld [vmem:[#allocation7 + $0xe8] sm:$0xff]
    %v660 = vld [vmem:[#allocation7 + $0xf0] sm:$0xff]
    %v661 = vld [vmem:[#allocation7 + $0xf8] sm:$0xff]
    %v662 = vld [vmem:[#allocation7 + $0x100] sm:$0xff]
    %v663 = vld [vmem:[#allocation7 + $0x108] sm:$0xff]
    %v664 = vld [vmem:[#allocation7 + $0x110] sm:$0xff]
    %v665 = vld [vmem:[#allocation7 + $0x118] sm:$0xff]
    %v666 = vld [vmem:[#allocation7 + $0x120] sm:$0xff]
    %v667 = vld [vmem:[#allocation7 + $0x128] sm:$0xff]
    %v668 = vld [vmem:[#allocation7 + $0x130] sm:$0xff]
    %v669 = vld [vmem:[#allocation7 + $0x138] sm:$0xff]
    %v670 = vld [vmem:[#allocation7 + $0x140] sm:$0xff]
    %v671 = vld [vmem:[#allocation7 + $0x148] sm:$0xff]
    %v672 = vld [vmem:[#allocation7 + $0x150] sm:$0xff]
    %v673 = vld [vmem:[#allocation7 + $0x158] sm:$0xff]
    %v674 = vld [vmem:[#allocation7 + $0x160] sm:$0xff]
    %v675 = vld [vmem:[#allocation7 + $0x168] sm:$0xff]
    %v676 = vld [vmem:[#allocation7 + $0x170] sm:$0xff]
    %v677 = vld [vmem:[#allocation7 + $0x178] sm:$0xff]
    %v678 = vld [vmem:[#allocation7 + $0x180] sm:$0xff]
    %v679 = vld [vmem:[#allocation7 + $0x188] sm:$0xff]
    %v680 = vld [vmem:[#allocation7 + $0x190] sm:$0xff]
    %v681 = vld [vmem:[#allocation7 + $0x198] sm:$0xff]
    %v682 = vld [vmem:[#allocation7 + $0x1a0] sm:$0xff]
    %v683 = vld [vmem:[#allocation7 + $0x1a8] sm:$0xff]
    %v684 = vld [vmem:[#allocation7 + $0x1b0] sm:$0xff]
    %v685 = vld [vmem:[#allocation7 + $0x1b8] sm:$0xff]
    %v686 = vld [vmem:[#allocation7 + $0x1c0] sm:$0xff]
    %v687 = vld [vmem:[#allocation7 + $0x1c8] sm:$0xff]
    %v688 = vld [vmem:[#allocation7 + $0x1d0] sm:$0xff]
    %v689 = vld [vmem:[#allocation7 + $0x1d8] sm:$0xff]
    %v690 = vld [vmem:[#allocation7 + $0x1e0] sm:$0xff]
    %v691 = vld [vmem:[#allocation7 + $0x1e8] sm:$0xff]
    %v692 = vld [vmem:[#allocation7 + $0x1f0] sm:$0xff]
    %v693 = vld [vmem:[#allocation7 + $0x1f8] sm:$0xff]
    %v694 = vld [vmem:[%s9] sm:$0x3]
    %v696 = vlaneseq
    %v697 = vshrl.u32 %v696, 7
    %v698 = vsub.s32 0, %v697
    %v699 = vrot.slane %v694, %v698
    %v700 = vlaneseq
    %v701 = vshrl.u32 %v700, 7
    %v702 = vsub.s32 1, %v701
    %v703 = vrot.slane %v694, %v702
    %706 = vmatprep.subr.mxu0 %v631
    %707 = vmatpush1.msra.mxu0 %v630
    %708 = vmatprep.subr.mxu0 %v633
    %709 = vmatpush1.msra.mxu0 %v632
    %710 = vmatprep.subr.mxu0 %v635
    %711 = vmatpush1.msra.mxu0 %v634
    %712 = vmatprep.subr.mxu0 %v637
    %713 = vmatpush1.msra.mxu0 %v636
    %714 = vmatprep.subr.mxu0 %v639
    %715 = vmatpush1.msra.mxu0 %v638
    %716 = vmatprep.subr.mxu0 %v641
    %717 = vmatpush1.msra.mxu0 %v640
    %718 = vmatprep.subr.mxu0 %v643
    %719 = vmatpush1.msra.mxu0 %v642
    %720 = vmatprep.subr.mxu0 %v645
    %721 = vmatpush1.msra.mxu0 %v644
    %722 = vmatprep.subr.mxu0 %v647
    %723 = vmatpush1.msra.mxu0 %v646
    %724 = vmatprep.subr.mxu0 %v649
    %725 = vmatpush1.msra.mxu0 %v648
    %726 = vmatprep.subr.mxu0 %v651
    %727 = vmatpush1.msra.mxu0 %v650
    %728 = vmatprep.subr.mxu0 %v653
    %729 = vmatpush1.msra.mxu0 %v652
    %730 = vmatprep.subr.mxu0 %v655
    %731 = vmatpush1.msra.mxu0 %v654
    %732 = vmatprep.subr.mxu0 %v657
    %733 = vmatpush1.msra.mxu0 %v656
    %734 = vmatprep.subr.mxu0 %v659
    %735 = vmatpush1.msra.mxu0 %v658
    %736 = vmatprep.subr.mxu0 %v661
    %737 = vmatpush1.msra.mxu0 %v660
    %738 = vmatprep.subr.mxu0 %v663
    %739 = vmatpush1.msra.mxu0 %v662
    %740 = vmatprep.subr.mxu0 %v665
    %741 = vmatpush1.msra.mxu0 %v664
    %742 = vmatprep.subr.mxu0 %v667
    %743 = vmatpush1.msra.mxu0 %v666
    %744 = vmatprep.subr.mxu0 %v669
    %745 = vmatpush1.msra.mxu0 %v668
    %746 = vmatprep.subr.mxu0 %v671
    %747 = vmatpush1.msra.mxu0 %v670
    %748 = vmatprep.subr.mxu0 %v673
    %749 = vmatpush1.msra.mxu0 %v672
    %750 = vmatprep.subr.mxu0 %v675
    %751 = vmatpush1.msra.mxu0 %v674
    %752 = vmatprep.subr.mxu0 %v677
    %753 = vmatpush1.msra.mxu0 %v676
    %754 = vmatprep.subr.mxu0 %v679
    %755 = vmatpush1.msra.mxu0 %v678
    %756 = vmatprep.subr.mxu0 %v681
    %757 = vmatpush1.msra.mxu0 %v680
    %758 = vmatprep.subr.mxu0 %v683
    %759 = vmatpush1.msra.mxu0 %v682
    %760 = vmatprep.subr.mxu0 %v685
    %761 = vmatpush1.msra.mxu0 %v684
    %762 = vmatprep.subr.mxu0 %v687
    %763 = vmatpush1.msra.mxu0 %v686
    %764 = vmatprep.subr.mxu0 %v689
    %765 = vmatpush1.msra.mxu0 %v688
    %766 = vmatprep.subr.mxu0 %v691
    %767 = vmatpush1.msra.mxu0 %v690
    %768 = vmatprep.subr.mxu0 %v693
    %769 = vmatpush1.msra.mxu0 %v692
    %770 = vmatprep.mubr.f32.mxu0 %v627
    %771 = vmatmul.mubr.f32.gmra.mrb[0].mxu0 %v626
    %v772 = vpop.f32.mrb[0].mxu0
    %v773 = vadd.f32 %v699, %v772
    %v774 = vpop.f32.mrb[0].mxu0
    %v775 = vadd.f32 %v703, %v774
    %776 = vmatprep.mubr.f32.mxu0 %v629
    %777 = vmatmul.mubr.f32.gmra.mrb[0].mxu0 %v628
    %v778 = vpop.f32.mrb[0].mxu0
    %v779 = vadd.f32 %v699, %v778
    %v780 = vpop.f32.mrb[0].mxu0
    %v781 = vadd.f32 %v703, %v780
    %782 = vdwg.mxu0
    %v783 = vmax.f32 %v773, 0.0
    %v784 = vmax.f32 %v775, 0.0
    %v785 = vmax.f32 %v779, 0.0
    %v786 = vmax.f32 %v781, 0.0
    %v787 = vld [vmem:[#allocation9] sm:$0xff]
    %v788 = vld [vmem:[#allocation9 + $0x8] sm:$0xff]
    %v789 = vld [vmem:[#allocation9 + $0x10] sm:$0xff]
    %v790 = vld [vmem:[#allocation9 + $0x18] sm:$0xff]
    %v791 = vld [vmem:[#allocation9 + $0x20] sm:$0xff]
    %v792 = vld [vmem:[#allocation9 + $0x28] sm:$0xff]
    %v793 = vld [vmem:[#allocation9 + $0x30] sm:$0xff]
    %v794 = vld [vmem:[#allocation9 + $0x38] sm:$0xff]
    %v795 = vld [vmem:[#allocation9 + $0x40] sm:$0xff]
    %v796 = vld [vmem:[#allocation9 + $0x48] sm:$0xff]
    %v797 = vld [vmem:[#allocation9 + $0x50] sm:$0xff]
    %v798 = vld [vmem:[#allocation9 + $0x58] sm:$0xff]
    %v799 = vld [vmem:[#allocation9 + $0x60] sm:$0xff]
    %v800 = vld [vmem:[#allocation9 + $0x68] sm:$0xff]
    %v801 = vld [vmem:[#allocation9 + $0x70] sm:$0xff]
    %v802 = vld [vmem:[#allocation9 + $0x78] sm:$0xff]
    %v803 = vld [vmem:[#allocation9 + $0x80] sm:$0xff]
    %v804 = vld [vmem:[#allocation9 + $0x88] sm:$0xff]
    %v805 = vld [vmem:[#allocation9 + $0x90] sm:$0xff]
    %v806 = vld [vmem:[#allocation9 + $0x98] sm:$0xff]
    %v807 = vld [vmem:[#allocation9 + $0xa0] sm:$0xff]
    %v808 = vld [vmem:[#allocation9 + $0xa8] sm:$0xff]
    %v809 = vld [vmem:[#allocation9 + $0xb0] sm:$0xff]
    %v810 = vld [vmem:[#allocation9 + $0xb8] sm:$0xff]
    %v811 = vld [vmem:[#allocation9 + $0xc0] sm:$0xff]
    %v812 = vld [vmem:[#allocation9 + $0xc8] sm:$0xff]
    %v813 = vld [vmem:[#allocation9 + $0xd0] sm:$0xff]
    %v814 = vld [vmem:[#allocation9 + $0xd8] sm:$0xff]
    %v815 = vld [vmem:[#allocation9 + $0xe0] sm:$0xff]
    %v816 = vld [vmem:[#allocation9 + $0xe8] sm:$0xff]
    %v817 = vld [vmem:[#allocation9 + $0xf0] sm:$0xff]
    %v818 = vld [vmem:[#allocation9 + $0xf8] sm:$0xff]
    %v819 = vld [vmem:[%s11] sm:$0x1]
    %v821 = vlaneseq
    %v822 = vshrl.u32 %v821, 7
    %v823 = vsub.s32 0, %v822
    %v824 = vrot.slane %v819, %v823
    %826 = vmatprep.subr.mxu0 0.0
    %827 = vmatpush1.msra.mxu0 %v787
    %828 = vmatprep.subr.mxu0 0.0
    %829 = vmatpush1.msra.mxu0 %v788
    %830 = vmatprep.subr.mxu0 0.0
    %831 = vmatpush1.msra.mxu0 %v789
    %832 = vmatprep.subr.mxu0 0.0
    %833 = vmatpush1.msra.mxu0 %v790
    %834 = vmatprep.subr.mxu0 0.0
    %835 = vmatpush1.msra.mxu0 %v791
    %836 = vmatprep.subr.mxu0 0.0
    %837 = vmatpush1.msra.mxu0 %v792
    %838 = vmatprep.subr.mxu0 0.0
    %839 = vmatpush1.msra.mxu0 %v793
    %840 = vmatprep.subr.mxu0 0.0
    %841 = vmatpush1.msra.mxu0 %v794
    %842 = vmatprep.subr.mxu0 0.0
    %843 = vmatpush1.msra.mxu0 %v795
    %844 = vmatprep.subr.mxu0 0.0
    %845 = vmatpush1.msra.mxu0 %v796
    %846 = vmatprep.subr.mxu0 0.0
    %847 = vmatpush1.msra.mxu0 %v797
    %848 = vmatprep.subr.mxu0 0.0
    %849 = vmatpush1.msra.mxu0 %v798
    %850 = vmatprep.subr.mxu0 0.0
    %851 = vmatpush1.msra.mxu0 %v799
    %852 = vmatprep.subr.mxu0 0.0
    %853 = vmatpush1.msra.mxu0 %v800
    %854 = vmatprep.subr.mxu0 0.0
    %855 = vmatpush1.msra.mxu0 %v801
    %856 = vmatprep.subr.mxu0 0.0
    %857 = vmatpush1.msra.mxu0 %v802
    %858 = vmatprep.subr.mxu0 0.0
    %859 = vmatpush1.msra.mxu0 %v803
    %860 = vmatprep.subr.mxu0 0.0
    %861 = vmatpush1.msra.mxu0 %v804
    %862 = vmatprep.subr.mxu0 0.0
    %863 = vmatpush1.msra.mxu0 %v805
    %864 = vmatprep.subr.mxu0 0.0
    %865 = vmatpush1.msra.mxu0 %v806
    %866 = vmatprep.subr.mxu0 0.0
    %867 = vmatpush1.msra.mxu0 %v807
    %868 = vmatprep.subr.mxu0 0.0
    %869 = vmatpush1.msra.mxu0 %v808
    %870 = vmatprep.subr.mxu0 0.0
    %871 = vmatpush1.msra.mxu0 %v809
    %872 = vmatprep.subr.mxu0 0.0
    %873 = vmatpush1.msra.mxu0 %v810
    %874 = vmatprep.subr.mxu0 0.0
    %875 = vmatpush1.msra.mxu0 %v811
    %876 = vmatprep.subr.mxu0 0.0
    %877 = vmatpush1.msra.mxu0 %v812
    %878 = vmatprep.subr.mxu0 0.0
    %879 = vmatpush1.msra.mxu0 %v813
    %880 = vmatprep.subr.mxu0 0.0
    %881 = vmatpush1.msra.mxu0 %v814
    %882 = vmatprep.subr.mxu0 0.0
    %883 = vmatpush1.msra.mxu0 %v815
    %884 = vmatprep.subr.mxu0 0.0
    %885 = vmatpush1.msra.mxu0 %v816
    %886 = vmatprep.subr.mxu0 0.0
    %887 = vmatpush1.msra.mxu0 %v817
    %888 = vmatprep.subr.mxu0 0.0
    %889 = vmatpush1.msra.mxu0 %v818
    %890 = vmatprep.mubr.f32.mxu0 %v784
    %891 = vmatmul.mubr.f32.gmra.mrb[0].mxu0 %v783
    %v892 = vpop.f32.mrb[0].mxu0
    %v893 = vadd.f32 %v824, %v892
    %v894 = vpop.f32.mrb[0].mxu0
    %895 = vmatprep.mubr.f32.mxu0 %v786
    %896 = vmatmul.mubr.f32.gmra.mrb[0].mxu0 %v785
    %v897 = vpop.f32.mrb[0].mxu0
    %v898 = vadd.f32 %v824, %v897
    %v899 = vpop.f32.mrb[0].mxu0
    %900 = vdwg.mxu0
    %901 = vst [vmem:[%s12] sm:$0xff] %v893
    %902 = vst [vmem:[%s12 + $0x8] sm:$0xff] %v898
    // Predicated region
    $region70: #{quantile_forward.1} parent=1 // pred_check
      _
    $region71: #{quantile_forward.1} parent=1 // pred_check_branch
      %904 = sbr.rel (0) target = $region73
    $region72: #{quantile_forward.1} parent=1 // pred_region
      _
    $region73: #{quantile_forward.1} parent=1 // pred_fallthru
      _
    // Predicated region
    $region74: #{quantile_forward.1} parent=1 // pred_check
      _
    $region75: #{quantile_forward.1} parent=1 // pred_check_branch
      %906 = sbr.rel (0) target = $region77
    $region76: #{quantile_forward.1} parent=1 // pred_region
      _
    $region77: #{quantile_forward.1} parent=1 // pred_fallthru
      _
    %907 = vsyncpa [#allocation3], 1
    %908 = vsyncpa [#allocation5], 1
    %909 = vsyncpa [#allocation8], 1

</llo_original>
